<compile_context>
chip_gen: v6e
topology: v6e:2x2x1
jax: 0.10.0
libtpu: 0.0.40
codegen_flags: <defaults>
</compile_context>

<pallas_src>
import jax
import jax.numpy as jnp
from jax.experimental import pallas as pl
from jax.experimental.pallas import tpu as pltpu


def _self_attention_kernel(x_ref, w_ref, b_ref, o_ref, k_scr, v_scr):
    bt, S, H = x_ref.shape
    tq = o_ref.shape[1]
    j = pl.program_id(1)

    @pl.when(j == 0)
    def _project_kv():
        # One (bt*S, H) @ (H, H) MXU pass each for K and V, once per batch
        # block (the x block index is (i, 0, 0) for every q step, so the x
        # buffer is resident across the whole q axis).  The reshapes only
        # merge/split the leading (batch) dims; the lane dim H is untouched.
        x2 = x_ref[...].reshape(bt * S, H)
        k = jnp.dot(x2, w_ref[1], preferred_element_type=jnp.float32) + b_ref[1]
        v = jnp.dot(x2, w_ref[2], preferred_element_type=jnp.float32) + b_ref[2]
        k_scr[...] = k.reshape(bt, S, H).astype(k_scr.dtype)
        v_scr[...] = v.reshape(bt, S, H).astype(v_scr.dtype)

    # Per-q-tile Q projection; the 1/sqrt(H) score scale is already folded
    # into w_ref[0] / b_ref[0] on the host.
    qs = pl.multiple_of(j * tq, tq)
    xq = x_ref[:, pl.ds(qs, tq), :].reshape(bt * tq, H)
    q = jnp.dot(xq, w_ref[0], preferred_element_type=jnp.float32) + b_ref[0]
    q = q.reshape(bt, tq, H).astype(k_scr.dtype)

    # scores = (Q/sqrt(H)) @ K^T — contract the last dims, no transpose.
    scores = jnp.einsum("bqh,bkh->bqk", q, k_scr[...],
                        preferred_element_type=jnp.float32)      # (bt, tq, S)

    # Numerically stable softmax in f32; normalize AFTER the PV matmul so the
    # VPU multiply is (bt, tq, H) instead of (bt, tq, S).
    m = jnp.max(scores, axis=-1, keepdims=True)
    e = jnp.exp(scores - m)
    l = jnp.sum(e, axis=-1, keepdims=True)
    pv = jnp.einsum("bqk,bkh->bqh", e.astype(v_scr.dtype), v_scr[...],
                    preferred_element_type=jnp.float32)          # (bt, tq, H)
    o_ref[...] = (pv * pl.reciprocal(l, approx=True)).astype(o_ref.dtype)


def _num_tensorcores():
    """2 on v7x (megacore sharding of the 'parallel' batch axis), else 1."""
    try:
        kind = jax.devices()[0].device_kind.lower()
        if "v7" in kind or "7x" in kind:
            return 2
    except Exception:
        pass
    return 1


def _vmem_limits():
    try:
        phys = int(getattr(pltpu.get_tpu_info(), "vmem_capacity_bytes",
                           64 * 1024 * 1024))
    except Exception:
        phys = 64 * 1024 * 1024
    # Explicit scoped-VMEM limit (defaults are 16/32 MiB); keep headroom.
    vmem_limit = min(phys * 3 // 4, 96 * 1024 * 1024)
    budget = int(vmem_limit * 0.7)
    return int(vmem_limit), budget


def self_attention(x, wq, bq, wk, bk, wv, bv, *, batch_block=None, q_block=512,
                   compute_dtype=jnp.bfloat16, out_dtype=None):
    """x: (B, S, H); weights (H, H) in PyTorch (out, in) layout; biases (H,)."""
    B, S, H = x.shape
    out_dtype = x.dtype if out_dtype is None else out_dtype
    scale = jnp.sqrt(jnp.float32(H))

    # ---- Host-side prep (runs once, outside the hot loop) -------------------
    #  * transpose to (H_in, H_out) so the kernel never transposes,
    #  * fold 1/sqrt(H) into the Q projection,
    #  * stack as (3, H, H) -> three (H,H) dots, no lane-dim slicing for any H,
    #  * cast weights AND x to the MXU compute dtype (bias stays f32 and is
    #    added to the f32 accumulator).
    w_qkv = jnp.stack([wq.T / scale, wk.T, wv.T], axis=0).astype(compute_dtype)
    b_qkv = jnp.stack([bq / scale, bk, bv], axis=0).reshape(3, 1, H).astype(jnp.float32)
    x_c = x.astype(compute_dtype)

    # ---- Query tile: largest divisor of S <= q_block that is a multiple of 8.
    if S <= q_block:
        tq = S
    else:
        tq = S
        for cand in range(min(S, q_block), 7, -1):
            if S % cand == 0 and cand % 8 == 0:
                tq = cand
                break
    grid_q = S // tq

    # ---- Generation-aware VMEM budgeting ------------------------------------
    cd_bytes = jnp.dtype(compute_dtype).itemsize
    out_bytes = jnp.dtype(out_dtype).itemsize
    vmem_limit, budget = _vmem_limits()

    per_b = (
        2 * S * H * cd_bytes            # x block (double-buffered)
        + 2 * S * H * cd_bytes          # K/V scratch (single copy each)
        + 2 * S * H * 4                 # f32 K/V peak during projection
        + tq * H * (4 + cd_bytes)       # Q tile: f32 accum + compute-dtype copy
        + tq * S * (8 + cd_bytes)       # scores f32 + exp f32 + bf16 copy
        + tq * H * 4                    # PV f32 accumulator
        + 2 * tq * H * out_bytes        # out block (double-buffered)
    )
    fixed = 2 * (3 * H * H * cd_bytes + 3 * H * 4)   # weights + biases

    if batch_block is None:
        bt = max(1, (budget - fixed) // max(per_b, 1))
        if _num_tensorcores() >= 2 and B >= 2:
            bt = min(bt, (B + 1) // 2)   # >= 2 grid steps -> both v7x TCs busy
        bt = max(1, min(bt, B))
        # Prefer an exact divisor of B if one exists near the target; otherwise
        # keep the target and let Pallas pad the ragged last batch block
        # (out-of-bounds rows are never written back).
        for cand in range(bt, 0, -1):
            if B % cand == 0:
                if cand * 2 >= bt:
                    bt = cand
                break
        batch_block = bt
    bt = int(batch_block)
    grid_b = pl.cdiv(B, bt)

    cost = pl.CostEstimate(
        flops=int(2 * B * S * H * 3 * H + 4 * B * S * S * H),
        transcendentals=int(B * S * S),
        bytes_accessed=int(B * S * H * (cd_bytes + out_bytes)
                           + w_qkv.size * cd_bytes + b_qkv.size * 4),
    )

    return pl.pallas_call(
        _self_attention_kernel,
        out_shape=jax.ShapeDtypeStruct((B, S, H), out_dtype),
        grid_spec=pltpu.PrefetchScalarGridSpec(
            num_scalar_prefetch=0,
            grid=(grid_b, grid_q),
            in_specs=[
                pl.BlockSpec((bt, S, H), lambda i, j: (i, 0, 0)),   # x (bf16)
                pl.BlockSpec((3, H, H), lambda i, j: (0, 0, 0)),    # stacked W^T
                pl.BlockSpec((3, 1, H), lambda i, j: (0, 0, 0)),    # stacked bias
            ],
            out_specs=pl.BlockSpec((bt, tq, H), lambda i, j: (i, j, 0)),
            scratch_shapes=[
                pltpu.VMEM((bt, S, H), compute_dtype),   # K, resident per batch block
                pltpu.VMEM((bt, S, H), compute_dtype),   # V, resident per batch block
            ],
        ),
        compiler_params=pltpu.CompilerParams(
            dimension_semantics=("parallel", "arbitrary"),
            vmem_limit_bytes=int(vmem_limit),
        ),
        cost_estimate=cost,
    )(x_c, w_qkv, b_qkv)


def _reference(x, wq, bq, wk, bk, wv, bv):
    """Pure-JAX f32 reference reproducing the PyTorch forward exactly."""
    q = jnp.einsum("bsh,oh->bso", x, wq) + bq
    k = jnp.einsum("bsh,oh->bso", x, wk) + bk
    v = jnp.einsum("bsh,oh->bso", x, wv) + bv
    scores = jnp.einsum("bqh,bkh->bqk", q, k) / jnp.sqrt(jnp.float32(x.shape[-1]))
    attn = jax.nn.softmax(scores, axis=-1)
    return jnp.einsum("bqk,bkh->bqh", attn, v)


if __name__ == "__main__":
    B, S, H = 2, 8, 32
    key = jax.random.PRNGKey(0)
    kx, kq, kbq, kk, kbk, kv, kbv = jax.random.split(key, 7)

    x = jax.random.normal(kx, (B, S, H), dtype=jnp.float32)
    # Deterministic init ~ nn.Linear default (uniform in [-1/sqrt(H), 1/sqrt(H)])
    lim = 1.0 / jnp.sqrt(jnp.float32(H))
    wq = jax.random.uniform(kq, (H, H), jnp.float32, -lim, lim)
    bq = jax.random.uniform(kbq, (H,), jnp.float32, -lim, lim)
    wk = jax.random.uniform(kk, (H, H), jnp.float32, -lim, lim)
    bk = jax.random.uniform(kbk, (H,), jnp.float32, -lim, lim)
    wv = jax.random.uniform(kv, (H, H), jnp.float32, -lim, lim)
    bv = jax.random.uniform(kbv, (H,), jnp.float32, -lim, lim)

    out = self_attention(x, wq, bq, wk, bk, wv, bv)
    out = jax.block_until_ready(out)

    ref = _reference(x, wq, bq, wk, bk, wv, bv)
    assert out.shape == (B, S, H)
    # bf16 MXU inputs + approx softmax reciprocal => loosened tolerance vs the
    # f32 reference (pass compute_dtype=jnp.float32 for a near-exact path).
    assert jnp.allclose(out, ref, atol=5e-2, rtol=5e-2), "mismatch vs reference"
    print("KERNEL_OK")
</pallas_src>

<mosaic_0001>
module attributes {stable_mosaic.version = 11 : i64} {
  func.func @_self_attention_kernel(%arg0: i32, %arg1: i32, %arg2: memref<2x8x32xbf16, #tpu.memory_space<vmem>>, %arg3: memref<3x32x32xbf16, #tpu.memory_space<vmem>>, %arg4: memref<3x1x32xf32, #tpu.memory_space<vmem>>, %arg5: memref<2x8x32xf32, #tpu.memory_space<vmem>>, %arg6: memref<2x8x32xbf16, #tpu.memory_space<vmem>>, %arg7: memref<2x8x32xbf16, #tpu.memory_space<vmem>>) attributes {dimension_semantics = [#tpu.dimension_semantics<parallel>, #tpu.dimension_semantics<arbitrary>], iteration_bounds = array<i64: 1, 1>, scalar_prefetch = 0 : i64, scratch_operands = 2 : i64, tpu.core_type = #tpu.core_type<tc>, window_params = [{transform_indices = @transform_0, window_bounds = array<i64: 2, 8, 32>}, {pipeline_mode = #tpu.pipeline_mode<synchronous>, transform_indices = @transform_1, window_bounds = array<i64: 3, 32, 32>}, {pipeline_mode = #tpu.pipeline_mode<synchronous>, transform_indices = @transform_2, window_bounds = array<i64: 3, 1, 32>}, {transform_indices = @transform_3, window_bounds = array<i64: 2, 8, 32>}]} {
    %c0_i32 = arith.constant 0 : i32
    %0 = arith.cmpi eq, %arg1, %c0_i32 : i32
    %1 = arith.extui %0 : i1 to i32
    %c0_i32_0 = arith.constant 0 : i32
    %2 = arith.cmpi ne, %1, %c0_i32_0 : i32
    scf.if %2 {
      %c0_21 = arith.constant 0 : index
      %c0_22 = arith.constant 0 : index
      %c0_23 = arith.constant 0 : index
      %33 = vector.load %arg2[%c0_21, %c0_22, %c0_23] : memref<2x8x32xbf16, #tpu.memory_space<vmem>>, vector<2x8x32xbf16>
      %34 = vector.shape_cast %33 : vector<2x8x32xbf16> to vector<16x32xbf16>
      %c1 = arith.constant 1 : index
      %c0_24 = arith.constant 0 : index
      %c0_25 = arith.constant 0 : index
      %35 = vector.load %arg3[%c1, %c0_24, %c0_25] : memref<3x32x32xbf16, #tpu.memory_space<vmem>>, vector<1x32x32xbf16>
      %36 = vector.shape_cast %35 : vector<1x32x32xbf16> to vector<32x32xbf16>
      %cst_26 = arith.constant dense<0.000000e+00> : vector<16x32xf32>
      %37 = tpu.matmul %34, %36, %cst_26 {dimension_numbers = #tpu.dot_dimension_numbers<[1], [0], [0], [1], [0, 0, 1, 1], [], []>} : vector<16x32xbf16>, vector<32x32xbf16>, vector<16x32xf32> -> vector<16x32xf32>
      %c1_27 = arith.constant 1 : index
      %c0_28 = arith.constant 0 : index
      %c0_29 = arith.constant 0 : index
      %38 = vector.load %arg4[%c1_27, %c0_28, %c0_29] : memref<3x1x32xf32, #tpu.memory_space<vmem>>, vector<1x1x32xf32>
      %39 = vector.shape_cast %38 : vector<1x1x32xf32> to vector<1x32xf32>
      %40 = vector.broadcast %39 : vector<1x32xf32> to vector<16x32xf32>
      %41 = arith.addf %37, %40 : vector<16x32xf32>
      %c2 = arith.constant 2 : index
      %c0_30 = arith.constant 0 : index
      %c0_31 = arith.constant 0 : index
      %42 = vector.load %arg3[%c2, %c0_30, %c0_31] : memref<3x32x32xbf16, #tpu.memory_space<vmem>>, vector<1x32x32xbf16>
      %43 = vector.shape_cast %42 : vector<1x32x32xbf16> to vector<32x32xbf16>
      %cst_32 = arith.constant dense<0.000000e+00> : vector<16x32xf32>
      %44 = tpu.matmul %34, %43, %cst_32 {dimension_numbers = #tpu.dot_dimension_numbers<[1], [0], [0], [1], [0, 0, 1, 1], [], []>} : vector<16x32xbf16>, vector<32x32xbf16>, vector<16x32xf32> -> vector<16x32xf32>
      %c2_33 = arith.constant 2 : index
      %c0_34 = arith.constant 0 : index
      %c0_35 = arith.constant 0 : index
      %45 = vector.load %arg4[%c2_33, %c0_34, %c0_35] : memref<3x1x32xf32, #tpu.memory_space<vmem>>, vector<1x1x32xf32>
      %46 = vector.shape_cast %45 : vector<1x1x32xf32> to vector<1x32xf32>
      %47 = vector.broadcast %46 : vector<1x32xf32> to vector<16x32xf32>
      %48 = arith.addf %44, %47 : vector<16x32xf32>
      %49 = vector.shape_cast %41 : vector<16x32xf32> to vector<2x8x32xf32>
      %50 = arith.truncf %49 : vector<2x8x32xf32> to vector<2x8x32xbf16>
      %c0_36 = arith.constant 0 : index
      %c0_37 = arith.constant 0 : index
      %c0_38 = arith.constant 0 : index
      %51 = vector.load %arg6[%c0_36, %c0_37, %c0_38] : memref<2x8x32xbf16, #tpu.memory_space<vmem>>, vector<2x8x32xbf16>
      tpu.vector_store %arg6[%c0_36, %c0_37, %c0_38], %50 {strides = array<i32>} : memref<2x8x32xbf16, #tpu.memory_space<vmem>>, vector<2x8x32xbf16>,
      %52 = vector.shape_cast %48 : vector<16x32xf32> to vector<2x8x32xf32>
      %53 = arith.truncf %52 : vector<2x8x32xf32> to vector<2x8x32xbf16>
      %c0_39 = arith.constant 0 : index
      %c0_40 = arith.constant 0 : index
      %c0_41 = arith.constant 0 : index
      %54 = vector.load %arg7[%c0_39, %c0_40, %c0_41] : memref<2x8x32xbf16, #tpu.memory_space<vmem>>, vector<2x8x32xbf16>
      tpu.vector_store %arg7[%c0_39, %c0_40, %c0_41], %53 {strides = array<i32>} : memref<2x8x32xbf16, #tpu.memory_space<vmem>>, vector<2x8x32xbf16>,
    } else {
    }
    %c8_i32 = arith.constant 8 : i32
    %3 = arith.muli %arg1, %c8_i32 : i32
    %4 = tpu.assume_multiple %3, 8 : i32
    %c0 = arith.constant 0 : index
    %5 = arith.index_cast %4 : i32 to index
    %c0_1 = arith.constant 0 : index
    %6 = vector.load %arg2[%c0, %5, %c0_1] : memref<2x8x32xbf16, #tpu.memory_space<vmem>>, vector<2x8x32xbf16>
    %7 = vector.shape_cast %6 : vector<2x8x32xbf16> to vector<16x32xbf16>
    %c0_2 = arith.constant 0 : index
    %c0_3 = arith.constant 0 : index
    %c0_4 = arith.constant 0 : index
    %8 = vector.load %arg3[%c0_2, %c0_3, %c0_4] : memref<3x32x32xbf16, #tpu.memory_space<vmem>>, vector<1x32x32xbf16>
    %9 = vector.shape_cast %8 : vector<1x32x32xbf16> to vector<32x32xbf16>
    %cst = arith.constant dense<0.000000e+00> : vector<16x32xf32>
    %10 = tpu.matmul %7, %9, %cst {dimension_numbers = #tpu.dot_dimension_numbers<[1], [0], [0], [1], [0, 0, 1, 1], [], []>} : vector<16x32xbf16>, vector<32x32xbf16>, vector<16x32xf32> -> vector<16x32xf32>
    %c0_5 = arith.constant 0 : index
    %c0_6 = arith.constant 0 : index
    %c0_7 = arith.constant 0 : index
    %11 = vector.load %arg4[%c0_5, %c0_6, %c0_7] : memref<3x1x32xf32, #tpu.memory_space<vmem>>, vector<1x1x32xf32>
    %12 = vector.shape_cast %11 : vector<1x1x32xf32> to vector<1x32xf32>
    %13 = vector.broadcast %12 : vector<1x32xf32> to vector<16x32xf32>
    %14 = arith.addf %10, %13 : vector<16x32xf32>
    %15 = vector.shape_cast %14 : vector<16x32xf32> to vector<2x8x32xf32>
    %16 = arith.truncf %15 : vector<2x8x32xf32> to vector<2x8x32xbf16>
    %c0_8 = arith.constant 0 : index
    %c0_9 = arith.constant 0 : index
    %c0_10 = arith.constant 0 : index
    %17 = vector.load %arg6[%c0_8, %c0_9, %c0_10] : memref<2x8x32xbf16, #tpu.memory_space<vmem>>, vector<2x8x32xbf16>
    "tpu.trace_start"() <{level = 10 : i32, message = "bqh,bkh->bqk"}> : () -> ()
    %cst_11 = arith.constant dense<0.000000e+00> : vector<2x8x8xf32>
    %18 = tpu.matmul %16, %17, %cst_11 {dimension_numbers = #tpu.dot_dimension_numbers<[2], [2], [1], [1], [0, 0, 0, 1, 1, 1], [0], [0]>} : vector<2x8x32xbf16>, vector<2x8x32xbf16>, vector<2x8x8xf32> -> vector<2x8x8xf32>
    "tpu.trace_stop"() : () -> ()
    %cst_12 = arith.constant dense<0xFF800000> : vector<2x8xf32>
    %19 = vector.multi_reduction <maximumf>, %18, %cst_12 [2] : vector<2x8x8xf32> to vector<2x8xf32>
    %20 = vector.shape_cast %19 : vector<2x8xf32> to vector<2x8x1xf32>
    %21 = vector.broadcast %20 : vector<2x8x1xf32> to vector<2x8x8xf32>
    %22 = arith.subf %18, %21 : vector<2x8x8xf32>
    %23 = math.exp %22 : vector<2x8x8xf32>
    %cst_13 = arith.constant dense<0.000000e+00> : vector<2x8xf32>
    %24 = vector.multi_reduction <add>, %23, %cst_13 [2] : vector<2x8x8xf32> to vector<2x8xf32>
    %25 = vector.shape_cast %24 : vector<2x8xf32> to vector<2x8x1xf32>
    %26 = arith.truncf %23 : vector<2x8x8xf32> to vector<2x8x8xbf16>
    %c0_14 = arith.constant 0 : index
    %c0_15 = arith.constant 0 : index
    %c0_16 = arith.constant 0 : index
    %27 = vector.load %arg7[%c0_14, %c0_15, %c0_16] : memref<2x8x32xbf16, #tpu.memory_space<vmem>>, vector<2x8x32xbf16>
    "tpu.trace_start"() <{level = 10 : i32, message = "bqk,bkh->bqh"}> : () -> ()
    %cst_17 = arith.constant dense<0.000000e+00> : vector<2x8x32xf32>
    %28 = tpu.matmul %26, %27, %cst_17 {dimension_numbers = #tpu.dot_dimension_numbers<[2], [1], [1], [2], [0, 0, 0, 1, 1, 2], [0], [0]>} : vector<2x8x8xbf16>, vector<2x8x32xbf16>, vector<2x8x32xf32> -> vector<2x8x32xf32>
    "tpu.trace_stop"() : () -> ()
    %29 = tpu.reciprocal %25 {approx = true} : vector<2x8x1xf32> -> vector<2x8x1xf32>
    %30 = vector.broadcast %29 : vector<2x8x1xf32> to vector<2x8x32xf32>
    %31 = arith.mulf %28, %30 : vector<2x8x32xf32>
    %c0_18 = arith.constant 0 : index
    %c0_19 = arith.constant 0 : index
    %c0_20 = arith.constant 0 : index
    %32 = vector.load %arg5[%c0_18, %c0_19, %c0_20] : memref<2x8x32xf32, #tpu.memory_space<vmem>>, vector<2x8x32xf32>
    tpu.vector_store %arg5[%c0_18, %c0_19, %c0_20], %31 {strides = array<i32>} : memref<2x8x32xf32, #tpu.memory_space<vmem>>, vector<2x8x32xf32>,
    return
  }
  func.func @transform_0(%arg0: i32, %arg1: i32) -> (i32, i32, i32) {
    %c0_i32 = arith.constant 0 : i32
    %c0_i32_0 = arith.constant 0 : i32
    %c0_i32_1 = arith.constant 0 : i32
    return %arg0, %c0_i32, %c0_i32_0 : i32, i32, i32
  }
  func.func @transform_1(%arg0: i32, %arg1: i32) -> (i32, i32, i32) {
    %c0_i32 = arith.constant 0 : i32
    %c0_i32_0 = arith.constant 0 : i32
    %c0_i32_1 = arith.constant 0 : i32
    %c0_i32_2 = arith.constant 0 : i32
    return %c0_i32, %c0_i32_0, %c0_i32_1 : i32, i32, i32
  }
  func.func @transform_2(%arg0: i32, %arg1: i32) -> (i32, i32, i32) {
    %c0_i32 = arith.constant 0 : i32
    %c0_i32_0 = arith.constant 0 : i32
    %c0_i32_1 = arith.constant 0 : i32
    %c0_i32_2 = arith.constant 0 : i32
    return %c0_i32, %c0_i32_0, %c0_i32_1 : i32, i32, i32
  }
  func.func @transform_3(%arg0: i32, %arg1: i32) -> (i32, i32, i32) {
    %c0_i32 = arith.constant 0 : i32
    %c0_i32_0 = arith.constant 0 : i32
    return %arg0, %arg1, %c0_i32 : i32, i32, i32
  }
}

</mosaic_0001>

<llo_original>
// kernel: tpu_custom_call.1
$region0: #{tpu_custom_call.1}
  #allocation0 [shape = 'u32[]', space=smem, size = 0x4, offset = 0x4, fixed_abs, tag = 'smem constant byte address 0x4 - core index']
  #allocation1 [shape = 'u32[144,128]{1,0:T(1,128)}', space=vmem, size = 0x12000, scoped, tag = 'internal scratch']
  #allocation2 [shape = 'bf16[2,8,32]{2,1,0:T(8,128)(2,1)}', space=vmem, size = 0x1000, scoped, tag = 'scratch operand']
  #allocation3 [shape = 'bf16[2,8,32]{2,1,0:T(8,128)(2,1)}', space=vmem, size = 0x1000, scoped, tag = 'scratch operand']
  %s0 = inlined_call_operand.hbm [shape: bf16[2,8,32], index: 0, kind: input, shape index: {}]
  %s1 = inlined_call_operand.hbm [shape: bf16[3,32,32], index: 1, kind: input, shape index: {}]
  %s2 = inlined_call_operand.vmem [shape: f32[3,1,32], index: 2, kind: input, shape index: {}]
  %s3 = inlined_call_operand.hbm [shape: f32[2,8,32], index: 3, kind: output, shape index: {}]
  %s4 = sld [smem:[#allocation0]]
  $region34: #{tpu_custom_call.1} parent=0
    _
  %s6 = ssub.s32 1, %s4
  %s7 = scalar_select 0, %s6, %s4
  $region1: #{tpu_custom_call.1} parent=0
    #allocation4 [shape = 'u8[4096]{0}', space=vmem, size = 0x1000, scoped, tag = 'input window, operand 0, single buffered']
    #allocation5 [shape = 's32[1]{0}', space=sflag, size = 0x4, scoped, tag = 'scoped memory for tpu_custom_call.1']
    #allocation6 [shape = 's32[1]{0}', space=sflag, size = 0x4, scoped, tag = 'scoped memory for tpu_custom_call.1']
    #allocation7 [shape = 'u8[24576]{0}', space=vmem, size = 0x6000, scoped, tag = 'input window, operand 1, single buffered']
    #allocation8 [shape = 's32[1]{0}', space=sflag, size = 0x4, scoped, tag = 'scoped memory for tpu_custom_call.1']
    #allocation9 [shape = 'u8[8192]{0}', space=vmem, size = 0x2000, scoped, tag = 'output window, operand 0, single buffered']
    %8 = vsyncpa [#allocation5], 0
    %9 = vsyncpa [#allocation8], 0
    %10 = vsyncpa [#allocation6], 0
    // Predicated region
    $region2: #{tpu_custom_call.1} parent=1 // pred_check
      _
    $region3: #{tpu_custom_call.1} parent=1 // pred_check_branch
      %12 = sbr.rel (0) target = $region5
    $region4: #{tpu_custom_call.1} parent=1 // pred_region
      %s14 = ssub.s32 128, 128
      %15 = vsyncadd [#allocation5], %s14
      %s16 = sshll.u32 [#allocation4], 4
      %s17 = int_to_ptr.vmem [resolvable:$true] %s16
      %22 = dma.hbm_to_vmem [thread:$0]  %s0, 128, %s17, [#allocation5], 64, 64, 4
    $region5: #{tpu_custom_call.1} parent=1 // pred_fallthru
      _
    // Predicated region
    $region6: #{tpu_custom_call.1} parent=1 // pred_check
      _
    $region7: #{tpu_custom_call.1} parent=1 // pred_check_branch
      %24 = sbr.rel (0) target = $region9
    $region8: #{tpu_custom_call.1} parent=1 // pred_region
      %s26 = ssub.s32 768, 768
      %27 = vsyncadd [#allocation8], %s26
      %s28 = sshll.u32 [#allocation7], 4
      %s29 = int_to_ptr.vmem [resolvable:$true] %s28
      %34 = dma.hbm_to_vmem [thread:$0]  %s1, 768, %s29, [#allocation8], 64, 64, 4
    $region9: #{tpu_custom_call.1} parent=1 // pred_fallthru
      _
    // Predicated region
    $region10: #{tpu_custom_call.1} parent=1 // pred_check
      _
    $region11: #{tpu_custom_call.1} parent=1 // pred_check_branch
      %36 = sbr.rel (0) target = $region13
    $region12: #{tpu_custom_call.1} parent=1 // pred_region
      _
    $region13: #{tpu_custom_call.1} parent=1 // pred_fallthru
      _
    // Predicated region
    $region14: #{tpu_custom_call.1} parent=1 // pred_check
      _
    $region15: #{tpu_custom_call.1} parent=1 // pred_check_branch
      %38 = sbr.rel (0) target = $region17
    $region16: #{tpu_custom_call.1} parent=1 // pred_region
      %39 = dma.done [#allocation5], 128
    $region17: #{tpu_custom_call.1} parent=1 // pred_fallthru
      _
    // Predicated region
    $region18: #{tpu_custom_call.1} parent=1 // pred_check
      _
    $region19: #{tpu_custom_call.1} parent=1 // pred_check_branch
      %41 = sbr.rel (0) target = $region21
    $region20: #{tpu_custom_call.1} parent=1 // pred_region
      %42 = dma.done [#allocation8], 768
    $region21: #{tpu_custom_call.1} parent=1 // pred_fallthru
      _
    %p44 = scmp.eq.s32.totalorder 0, 0
    // Predicated region
    $region22: #{tpu_custom_call.1} parent=1 // pred_check
      %p45 = pneg %p44
    $region23: #{tpu_custom_call.1} parent=1 // pred_check_branch
      %47 = sbr.rel (%p45) target = $region25
    $region24: #{tpu_custom_call.1} parent=1 // pred_region
      %v48 = vld [vmem:[#allocation4] sm:$0xf]
      %v49 = vld [vmem:[#allocation4 + $0x4] sm:$0xf]
      %s50 = scalar_lea.vmem [#allocation7], 16
      %v51 = vld [vmem:[%s50] sm:$0xf]
      %v52 = vld [vmem:[%s50 + $0x4] sm:$0xf]
      %v53 = vld [vmem:[%s50 + $0x8] sm:$0xf]
      %v54 = vld [vmem:[%s50 + $0xc] sm:$0xf]
      %s55 = scalar_lea.vmem %s2, 1
      %v56 = vld [vmem:[%s55] sm:$0x1]
      %v58 = vlaneseq
      %v59 = vshrl.u32 %v58, 7
      %v60 = vsub.s32 0, %v59
      %v61 = vrot.slane %v56, %v60
      %v65 = vunpack.c.l.b16 %v48
      %v66 = vunpack.c.l.b16 %v49
      %v67 = vpack.c.b16 %v66, %v65
      %v72 = vunpack.c.l.b16 %v51
      %v73 = vunpack.c.l.b16 %v52
      %v74 = vunpack.c.l.b16 %v53
      %v75 = vunpack.c.l.b16 %v54
      %v76 = vpack.c.b16 %v73, %v72
      %v77 = vpack.c.b16 %v75, %v74
      %vm80 = vcmask 261120
      %v82 = vsel %vm80, %v67, 0
      %84 = vmatprep.subr.bf16.mxu0 0
      %85 = vmatpush1.bf16.msra.mxu0 0
      %86 = vmatprep.subr.bf16.mxu0 0
      %87 = vmatpush1.bf16.msra.mxu0 0
      %88 = vmatprep.subr.bf16.mxu0 0
      %89 = vmatpush1.bf16.msra.mxu0 0
      %90 = vmatprep.subr.bf16.mxu0 0
      %91 = vmatpush1.bf16.msra.mxu0 0
      %92 = vmatprep.subr.bf16.mxu0 0
      %93 = vmatpush1.bf16.msra.mxu0 0
      %94 = vmatprep.subr.bf16.mxu0 0
      %95 = vmatpush1.bf16.msra.mxu0 0
      %96 = vmatprep.subr.bf16.mxu0 0
      %97 = vmatpush1.bf16.msra.mxu0 %v77
      %98 = vmatprep.subr.bf16.mxu0 0
      %99 = vmatpush1.bf16.msra.mxu0 %v76
      %100 = vmatprep.subr.bf16.mxu0 0
      %101 = vmatpush2.bf16.msra.mxu0 0
      %102 = vmatprep.subr.bf16.mxu0 0
      %103 = vmatpush2.bf16.msra.mxu0 0
      %104 = vmatprep.subr.bf16.mxu0 0
      %105 = vmatpush2.bf16.msra.mxu0 0
      %106 = vmatprep.subr.bf16.mxu0 0
      %107 = vmatpush2.bf16.msra.mxu0 0
      %108 = vmatprep.subr.bf16.mxu0 0
      %109 = vmatpush2.bf16.msra.mxu0 0
      %110 = vmatprep.subr.bf16.mxu0 0
      %111 = vmatpush2.bf16.msra.mxu0 0
      %112 = vmatprep.subr.bf16.mxu0 0
      %113 = vmatpush2.bf16.msra.mxu0 0
      %114 = vmatprep.subr.bf16.mxu0 0
      %115 = vmatpush2.bf16.msra.mxu0 0
      %116 = vmatprep.mubr.bf16.mxu0 0
      %117 = vmatmul.mubr.bf16.gmra.mxu0 %v82
      %v118 = vpop.f32.mrf.mxu0
      %v119 = vadd.f32 %v61, %v118
      %v120 = vpop.f32.mrf.mxu0
      %v121 = vpop.f32.mrf.mxu0
      %v122 = vadd.f32 %v61, %v121
      %v123 = vpop.f32.mrf.mxu0
      %124 = vdwg.mxu0
      %s125 = scalar_lea.vmem [#allocation7], 32
      %v126 = vld [vmem:[%s125] sm:$0xf]
      %v127 = vld [vmem:[%s125 + $0x4] sm:$0xf]
      %v128 = vld [vmem:[%s125 + $0x8] sm:$0xf]
      %v129 = vld [vmem:[%s125 + $0xc] sm:$0xf]
      %s130 = scalar_lea.vmem %s2, 2
      %v131 = vld [vmem:[%s130] sm:$0x1]
      %v133 = vlaneseq
      %v134 = vshrl.u32 %v133, 7
      %v135 = vsub.s32 0, %v134
      %v136 = vrot.slane %v131, %v135
      %v142 = vunpack.c.l.b16 %v126
      %v143 = vunpack.c.l.b16 %v127
      %v144 = vunpack.c.l.b16 %v128
      %v145 = vunpack.c.l.b16 %v129
      %v146 = vpack.c.b16 %v143, %v142
      %v147 = vpack.c.b16 %v145, %v144
      %150 = vmatprep.subr.bf16.mxu0 0
      %151 = vmatpush1.bf16.msra.mxu0 0
      %152 = vmatprep.subr.bf16.mxu0 0
      %153 = vmatpush1.bf16.msra.mxu0 0
      %154 = vmatprep.subr.bf16.mxu0 0
      %155 = vmatpush1.bf16.msra.mxu0 0
      %156 = vmatprep.subr.bf16.mxu0 0
      %157 = vmatpush1.bf16.msra.mxu0 0
      %158 = vmatprep.subr.bf16.mxu0 0
      %159 = vmatpush1.bf16.msra.mxu0 0
      %160 = vmatprep.subr.bf16.mxu0 0
      %161 = vmatpush1.bf16.msra.mxu0 0
      %162 = vmatprep.subr.bf16.mxu0 0
      %163 = vmatpush1.bf16.msra.mxu0 %v147
      %164 = vmatprep.subr.bf16.mxu0 0
      %165 = vmatpush1.bf16.msra.mxu0 %v146
      %166 = vmatprep.subr.bf16.mxu0 0
      %167 = vmatpush2.bf16.msra.mxu0 0
      %168 = vmatprep.subr.bf16.mxu0 0
      %169 = vmatpush2.bf16.msra.mxu0 0
      %170 = vmatprep.subr.bf16.mxu0 0
      %171 = vmatpush2.bf16.msra.mxu0 0
      %172 = vmatprep.subr.bf16.mxu0 0
      %173 = vmatpush2.bf16.msra.mxu0 0
      %174 = vmatprep.subr.bf16.mxu0 0
      %175 = vmatpush2.bf16.msra.mxu0 0
      %176 = vmatprep.subr.bf16.mxu0 0
      %177 = vmatpush2.bf16.msra.mxu0 0
      %178 = vmatprep.subr.bf16.mxu0 0
      %179 = vmatpush2.bf16.msra.mxu0 0
      %180 = vmatprep.subr.bf16.mxu0 0
      %181 = vmatpush2.bf16.msra.mxu0 0
      %182 = vmatprep.mubr.bf16.mxu0 0
      %183 = vmatmul.mubr.bf16.gmra.mxu0 %v82
      %v184 = vpop.f32.mrf.mxu0
      %v185 = vadd.f32 %v136, %v184
      %v186 = vpop.f32.mrf.mxu0
      %v187 = vpop.f32.mrf.mxu0
      %v188 = vadd.f32 %v136, %v187
      %v189 = vpop.f32.mrf.mxu0
      %190 = vdwg.mxu0
      %v191 = vpack.c.bf16 %v119, %v119
      %v192 = vpack.c.bf16 %v122, %v122
      %vm193 = vcmask 257024
      %194 = vst.msk [vmem:[#allocation2] sm:$0xf] %vm193, %v191
      %195 = vst.msk [vmem:[#allocation2 + $0x4] sm:$0xf] %vm193, %v192
      %v196 = vpack.c.bf16 %v185, %v185
      %v197 = vpack.c.bf16 %v188, %v188
      %198 = vst.msk [vmem:[#allocation3] sm:$0xf] %vm193, %v196
      %199 = vst.msk [vmem:[#allocation3 + $0x4] sm:$0xf] %vm193, %v197
    $region25: #{tpu_custom_call.1} parent=1 // pred_fallthru
      _
    %s200 = smul.u32 0, 8
    %s201 = sshra.s32 %s200, 3
    %s202 = sand.u32 %s200, 7
    %s203 = smul.addr %s201, 4
    %s204 = scalar_lea.vmem [#allocation4], %s203
    %v205 = vld [vmem:[%s204] sm:$0xf]
    %v206 = vld [vmem:[%s204 + $0x4] sm:$0xf]
    %v207 = vld [vmem:[#allocation7] sm:$0xf]
    %v208 = vld [vmem:[#allocation7 + $0x4] sm:$0xf]
    %v209 = vld [vmem:[#allocation7 + $0x8] sm:$0xf]
    %v210 = vld [vmem:[#allocation7 + $0xc] sm:$0xf]
    %v211 = vld [vmem:[%s2] sm:$0x1]
    %v213 = vlaneseq
    %v214 = vshrl.u32 %v213, 7
    %v215 = vsub.s32 0, %v214
    %v216 = vrot.slane %v211, %v215
    %v220 = vunpack.c.l.b16 %v205
    %v221 = vunpack.c.l.b16 %v206
    %v222 = vpack.c.b16 %v221, %v220
    %v227 = vunpack.c.l.b16 %v207
    %v228 = vunpack.c.l.b16 %v208
    %v229 = vunpack.c.l.b16 %v209
    %v230 = vunpack.c.l.b16 %v210
    %v231 = vpack.c.b16 %v228, %v227
    %v232 = vpack.c.b16 %v230, %v229
    %vm235 = vcmask 261120
    %v237 = vsel %vm235, %v222, 0
    %239 = vmatprep.subr.bf16.mxu0 0
    %240 = vmatpush1.bf16.msra.mxu0 0
    %241 = vmatprep.subr.bf16.mxu0 0
    %242 = vmatpush1.bf16.msra.mxu0 0
    %243 = vmatprep.subr.bf16.mxu0 0
    %244 = vmatpush1.bf16.msra.mxu0 0
    %245 = vmatprep.subr.bf16.mxu0 0
    %246 = vmatpush1.bf16.msra.mxu0 0
    %247 = vmatprep.subr.bf16.mxu0 0
    %248 = vmatpush1.bf16.msra.mxu0 0
    %249 = vmatprep.subr.bf16.mxu0 0
    %250 = vmatpush1.bf16.msra.mxu0 0
    %251 = vmatprep.subr.bf16.mxu0 0
    %252 = vmatpush1.bf16.msra.mxu0 %v232
    %253 = vmatprep.subr.bf16.mxu0 0
    %254 = vmatpush1.bf16.msra.mxu0 %v231
    %255 = vmatprep.subr.bf16.mxu0 0
    %256 = vmatpush2.bf16.msra.mxu0 0
    %257 = vmatprep.subr.bf16.mxu0 0
    %258 = vmatpush2.bf16.msra.mxu0 0
    %259 = vmatprep.subr.bf16.mxu0 0
    %260 = vmatpush2.bf16.msra.mxu0 0
    %261 = vmatprep.subr.bf16.mxu0 0
    %262 = vmatpush2.bf16.msra.mxu0 0
    %263 = vmatprep.subr.bf16.mxu0 0
    %264 = vmatpush2.bf16.msra.mxu0 0
    %265 = vmatprep.subr.bf16.mxu0 0
    %266 = vmatpush2.bf16.msra.mxu0 0
    %267 = vmatprep.subr.bf16.mxu0 0
    %268 = vmatpush2.bf16.msra.mxu0 0
    %269 = vmatprep.subr.bf16.mxu0 0
    %270 = vmatpush2.bf16.msra.mxu0 0
    %271 = vmatprep.mubr.bf16.mxu0 0
    %272 = vmatmul.mubr.bf16.gmra.mxu0 %v237
    %v273 = vpop.f32.mrf.mxu0
    %v274 = vadd.f32 %v216, %v273
    %v275 = vpop.f32.mrf.mxu0
    %v276 = vpop.f32.mrf.mxu0
    %v277 = vadd.f32 %v216, %v276
    %v278 = vpop.f32.mrf.mxu0
    %279 = vdwg.mxu0
    %v280 = vpack.c.bf16 %v274, %v274
    %v281 = vpack.c.bf16 %v277, %v277
    %v282 = vld [vmem:[#allocation2] sm:$0xf]
    %v283 = vld [vmem:[#allocation2 + $0x4] sm:$0xf]
    %v285 = vsel %vm235, %v280, 0
    %v288 = vsel %vm235, %v282, 0
    %290 = vmatprep.subr.bf16.mxu0 0
    %291 = vmatpush1.bf16.xpose.msra.mxu0 0
    %292 = vmatprep.subr.bf16.mxu0 0
    %293 = vmatpush1.bf16.xpose.msra.mxu0 0
    %294 = vmatprep.subr.bf16.mxu0 0
    %295 = vmatpush1.bf16.xpose.msra.mxu0 0
    %296 = vmatprep.subr.bf16.mxu0 0
    %297 = vmatpush1.bf16.xpose.msra.mxu0 0
    %298 = vmatprep.subr.bf16.mxu0 0
    %299 = vmatpush1.bf16.xpose.msra.mxu0 0
    %300 = vmatprep.subr.bf16.mxu0 0
    %301 = vmatpush1.bf16.xpose.msra.mxu0 0
    %302 = vmatprep.subr.bf16.mxu0 0
    %303 = vmatpush1.bf16.xpose.msra.mxu0 0
    %304 = vmatprep.subr.bf16.mxu0 0
    %305 = vmatpush1.bf16.xpose.msra.mxu0 %v288
    %306 = vmatprep.subr.bf16.mxu0 0
    %307 = vmatpush2.bf16.xpose.msra.mxu0 0
    %308 = vmatprep.subr.bf16.mxu0 0
    %309 = vmatpush2.bf16.xpose.msra.mxu0 0
    %310 = vmatprep.subr.bf16.mxu0 0
    %311 = vmatpush2.bf16.xpose.msra.mxu0 0
    %312 = vmatprep.subr.bf16.mxu0 0
    %313 = vmatpush2.bf16.xpose.msra.mxu0 0
    %314 = vmatprep.subr.bf16.mxu0 0
    %315 = vmatpush2.bf16.xpose.msra.mxu0 0
    %316 = vmatprep.subr.bf16.mxu0 0
    %317 = vmatpush2.bf16.xpose.msra.mxu0 0
    %318 = vmatprep.subr.bf16.mxu0 0
    %319 = vmatpush2.bf16.xpose.msra.mxu0 0
    %320 = vmatprep.subr.bf16.mxu0 0
    %321 = vmatpush2.bf16.xpose.msra.mxu0 0
    %322 = vmatprep.mubr.bf16.mxu0 0
    %323 = vmatmul.mubr.bf16.gmra.mxu0 %v285
    %v324 = vpop.f32.mrf.mxu0
    %v325 = vadd.f32 0.0, %v324
    %v326 = vpop.f32.mrf.mxu0
    %v327 = vpop.f32.mrf.mxu0
    %v328 = vpop.f32.mrf.mxu0
    %329 = vdwg.mxu0
    %v331 = vsel %vm235, %v281, 0
    %v334 = vsel %vm235, %v283, 0
    %336 = vmatprep.subr.bf16.mxu0 0
    %337 = vmatpush1.bf16.xpose.msra.mxu0 0
    %338 = vmatprep.subr.bf16.mxu0 0
    %339 = vmatpush1.bf16.xpose.msra.mxu0 0
    %340 = vmatprep.subr.bf16.mxu0 0
    %341 = vmatpush1.bf16.xpose.msra.mxu0 0
    %342 = vmatprep.subr.bf16.mxu0 0
    %343 = vmatpush1.bf16.xpose.msra.mxu0 0
    %344 = vmatprep.subr.bf16.mxu0 0
    %345 = vmatpush1.bf16.xpose.msra.mxu0 0
    %346 = vmatprep.subr.bf16.mxu0 0
    %347 = vmatpush1.bf16.xpose.msra.mxu0 0
    %348 = vmatprep.subr.bf16.mxu0 0
    %349 = vmatpush1.bf16.xpose.msra.mxu0 0
    %350 = vmatprep.subr.bf16.mxu0 0
    %351 = vmatpush1.bf16.xpose.msra.mxu0 %v334
    %352 = vmatprep.subr.bf16.mxu0 0
    %353 = vmatpush2.bf16.xpose.msra.mxu0 0
    %354 = vmatprep.subr.bf16.mxu0 0
    %355 = vmatpush2.bf16.xpose.msra.mxu0 0
    %356 = vmatprep.subr.bf16.mxu0 0
    %357 = vmatpush2.bf16.xpose.msra.mxu0 0
    %358 = vmatprep.subr.bf16.mxu0 0
    %359 = vmatpush2.bf16.xpose.msra.mxu0 0
    %360 = vmatprep.subr.bf16.mxu0 0
    %361 = vmatpush2.bf16.xpose.msra.mxu0 0
    %362 = vmatprep.subr.bf16.mxu0 0
    %363 = vmatpush2.bf16.xpose.msra.mxu0 0
    %364 = vmatprep.subr.bf16.mxu0 0
    %365 = vmatpush2.bf16.xpose.msra.mxu0 0
    %366 = vmatprep.subr.bf16.mxu0 0
    %367 = vmatpush2.bf16.xpose.msra.mxu0 0
    %368 = vmatprep.mubr.bf16.mxu0 0
    %369 = vmatmul.mubr.bf16.gmra.mxu0 %v331
    %v370 = vpop.f32.mrf.mxu0
    %v371 = vadd.f32 0.0, %v370
    %v372 = vpop.f32.mrf.mxu0
    %v373 = vpop.f32.mrf.mxu0
    %v374 = vpop.f32.mrf.mxu0
    %375 = vdwg.mxu0
    %vm376 = vcmask 64512
    %v377 = vsel %vm376, %v325, -inf
    %378 = vmax.xlane.f32.xlu0 %v377
    %v379 = vpop.xlane.xlu0 %378
    %v380 = vsel %vm376, %v371, -inf
    %381 = vmax.xlane.f32.xlu0 %v380
    %v382 = vpop.xlane.xlu0 %381
    %v383 = vsub.f32 %v325, %v379
    %v384 = vsub.f32 %v371, %v382
    %v385 = vmul.f32 %v383, 1.442695
    %v386 = vpow.pop %v385
    %v387 = vmul.f32 %v384, 1.442695
    %v388 = vpow.pop %v387
    %v389 = vsel %vm376, %v386, 0.0
    %390 = vadd.xlane.f32.xlu0 %v389
    %v391 = vpop.xlane.xlu0 %390
    %v392 = vsel %vm376, %v388, 0.0
    %393 = vadd.xlane.f32.xlu0 %v392
    %v394 = vpop.xlane.xlu0 %393
    %v395 = vpack.c.bf16 %v386, %v386
    %v396 = vpack.c.bf16 %v388, %v388
    %v397 = vld [vmem:[#allocation3] sm:$0xf]
    %v398 = vld [vmem:[#allocation3 + $0x4] sm:$0xf]
    %v400 = vsel %vm376, %v395, 0
    %vm402 = vcmask 1043456
    %v404 = vsel %vm402, %v397, 0
    %406 = vmatprep.subr.bf16.mxu0 0
    %407 = vmatpush1.bf16.msra.mxu0 0
    %408 = vmatprep.subr.bf16.mxu0 0
    %409 = vmatpush1.bf16.msra.mxu0 0
    %410 = vmatprep.subr.bf16.mxu0 0
    %411 = vmatpush1.bf16.msra.mxu0 0
    %412 = vmatprep.subr.bf16.mxu0 0
    %413 = vmatpush1.bf16.msra.mxu0 0
    %414 = vmatprep.subr.bf16.mxu0 0
    %415 = vmatpush1.bf16.msra.mxu0 0
    %416 = vmatprep.subr.bf16.mxu0 0
    %417 = vmatpush1.bf16.msra.mxu0 0
    %418 = vmatprep.subr.bf16.mxu0 0
    %419 = vmatpush1.bf16.msra.mxu0 0
    %420 = vmatprep.subr.bf16.mxu0 0
    %421 = vmatpush1.bf16.msra.mxu0 %v404
    %422 = vmatprep.subr.bf16.mxu0 0
    %423 = vmatpush2.bf16.msra.mxu0 0
    %424 = vmatprep.subr.bf16.mxu0 0
    %425 = vmatpush2.bf16.msra.mxu0 0
    %426 = vmatprep.subr.bf16.mxu0 0
    %427 = vmatpush2.bf16.msra.mxu0 0
    %428 = vmatprep.subr.bf16.mxu0 0
    %429 = vmatpush2.bf16.msra.mxu0 0
    %430 = vmatprep.subr.bf16.mxu0 0
    %431 = vmatpush2.bf16.msra.mxu0 0
    %432 = vmatprep.subr.bf16.mxu0 0
    %433 = vmatpush2.bf16.msra.mxu0 0
    %434 = vmatprep.subr.bf16.mxu0 0
    %435 = vmatpush2.bf16.msra.mxu0 0
    %436 = vmatprep.subr.bf16.mxu0 0
    %437 = vmatpush2.bf16.msra.mxu0 0
    %438 = vmatprep.mubr.bf16.mxu0 0
    %439 = vmatmul.mubr.bf16.gmra.mxu0 %v400
    %v440 = vpop.f32.mrf.mxu0
    %v441 = vadd.f32 0.0, %v440
    %v442 = vpop.f32.mrf.mxu0
    %v443 = vpop.f32.mrf.mxu0
    %v444 = vpop.f32.mrf.mxu0
    %445 = vdwg.mxu0
    %v447 = vsel %vm376, %v396, 0
    %v450 = vsel %vm402, %v398, 0
    %452 = vmatprep.subr.bf16.mxu0 0
    %453 = vmatpush1.bf16.msra.mxu0 0
    %454 = vmatprep.subr.bf16.mxu0 0
    %455 = vmatpush1.bf16.msra.mxu0 0
    %456 = vmatprep.subr.bf16.mxu0 0
    %457 = vmatpush1.bf16.msra.mxu0 0
    %458 = vmatprep.subr.bf16.mxu0 0
    %459 = vmatpush1.bf16.msra.mxu0 0
    %460 = vmatprep.subr.bf16.mxu0 0
    %461 = vmatpush1.bf16.msra.mxu0 0
    %462 = vmatprep.subr.bf16.mxu0 0
    %463 = vmatpush1.bf16.msra.mxu0 0
    %464 = vmatprep.subr.bf16.mxu0 0
    %465 = vmatpush1.bf16.msra.mxu0 0
    %466 = vmatprep.subr.bf16.mxu0 0
    %467 = vmatpush1.bf16.msra.mxu0 %v450
    %468 = vmatprep.subr.bf16.mxu0 0
    %469 = vmatpush2.bf16.msra.mxu0 0
    %470 = vmatprep.subr.bf16.mxu0 0
    %471 = vmatpush2.bf16.msra.mxu0 0
    %472 = vmatprep.subr.bf16.mxu0 0
    %473 = vmatpush2.bf16.msra.mxu0 0
    %474 = vmatprep.subr.bf16.mxu0 0
    %475 = vmatpush2.bf16.msra.mxu0 0
    %476 = vmatprep.subr.bf16.mxu0 0
    %477 = vmatpush2.bf16.msra.mxu0 0
    %478 = vmatprep.subr.bf16.mxu0 0
    %479 = vmatpush2.bf16.msra.mxu0 0
    %480 = vmatprep.subr.bf16.mxu0 0
    %481 = vmatpush2.bf16.msra.mxu0 0
    %482 = vmatprep.subr.bf16.mxu0 0
    %483 = vmatpush2.bf16.msra.mxu0 0
    %484 = vmatprep.mubr.bf16.mxu0 0
    %485 = vmatmul.mubr.bf16.gmra.mxu0 %v447
    %v486 = vpop.f32.mrf.mxu0
    %v487 = vadd.f32 0.0, %v486
    %v488 = vpop.f32.mrf.mxu0
    %v489 = vpop.f32.mrf.mxu0
    %v490 = vpop.f32.mrf.mxu0
    %491 = vdwg.mxu0
    %v492 = vrcp.pop %v391
    %v493 = vrcp.pop %v394
    %v494 = vmul.f32 %v441, %v492
    %v495 = vmul.f32 %v487, %v493
    %496 = vst.msk [vmem:[#allocation9] sm:$0xff] %vm235, %v494
    %497 = vst.msk [vmem:[#allocation9 + $0x8] sm:$0xff] %vm235, %v495
    // Predicated region
    $region26: #{tpu_custom_call.1} parent=1 // pred_check
      _
    $region27: #{tpu_custom_call.1} parent=1 // pred_check_branch
      %499 = sbr.rel (0) target = $region29
    $region28: #{tpu_custom_call.1} parent=1 // pred_region
      %s501 = ssub.s32 256, 256
      %502 = vsyncadd [#allocation6], %s501
      %s503 = sshll.u32 [#allocation9], 4
      %s504 = int_to_ptr.vmem [resolvable:$true] %s503
      %509 = dma.vmem_to_hbm [thread:$0]  %s504, 256, %s3, [#allocation6], 128, 128, 8
    $region29: #{tpu_custom_call.1} parent=1 // pred_fallthru
      _
    // Predicated region
    $region30: #{tpu_custom_call.1} parent=1 // pred_check
      _
    $region31: #{tpu_custom_call.1} parent=1 // pred_check_branch
      %511 = sbr.rel (0) target = $region33
    $region32: #{tpu_custom_call.1} parent=1 // pred_region
      %512 = dma.done [#allocation6], 256
    $region33: #{tpu_custom_call.1} parent=1 // pred_fallthru
      _
    %513 = vsyncpa [#allocation5], 1
    %514 = vsyncpa [#allocation8], 1
    %515 = vsyncpa [#allocation6], 1

</llo_original>
